<compile_context>
chip_gen: v7x
topology: tpu7x:2x2x1
jax: 0.10.0
libtpu: 0.0.40
codegen_flags: <defaults>
</compile_context>

<pallas_src>
import functools

import jax
import jax.numpy as jnp
from jax import lax
from jax.experimental import pallas as pl
from jax.experimental.pallas import tpu as pltpu


def _round_up(n: int, m: int) -> int:
    return ((n + m - 1) // m) * m


def _center_loss_kernel(labels_ref, x_ref, c_ref, out_ref, *, batch_size: int):
    """One grid step processes one batch tile of `tb` rows (fully parallel).

    labels_ref : VMEM (tb, 1) int32   labels for this tile
    x_ref      : VMEM (tb, D) f32     feature tile
    c_ref      : VMEM (C, D)  f32     full centers table (constant block index)
    out_ref    : VMEM (tb, 1) f32     clamped per-row squared distances
    """
    i = pl.program_id(0)
    tb = x_ref.shape[0]
    num_classes = c_ref.shape[0]

    # Vectorized gather of centers[labels] via a one-hot MXU matmul.
    onehot = (labels_ref[...] ==
              lax.broadcasted_iota(jnp.int32, (tb, num_classes), 1)
              ).astype(jnp.float32)                                   # (tb, C)
    gathered = jnp.dot(onehot, c_ref[...],
                       preferred_element_type=jnp.float32)            # (tb, D)

    # Per-row squared distance, clamped exactly like the torch reference.
    diff = x_ref[...] - gathered
    dist = jnp.sum(diff * diff, axis=1, keepdims=True)                # (tb, 1)
    dist = jnp.clip(dist, 1e-12, 1e12)

    # Zero padded rows (B was padded up to a multiple of tb); B is static.
    rows = i * tb + lax.broadcasted_iota(jnp.int32, (tb, 1), 0)
    out_ref[...] = jnp.where(rows < batch_size, dist, 0.0)


def _pick_tile(B: int, C: int, D: int, block_b: int):
    """Pick the batch tile (multiple of 8) and an explicit VMEM limit."""
    budget = 48 * 1024 * 1024          # conservative: fits v7x's 64 MiB VMEM
    c_pad = _round_up(C, 128)
    tb = min(_round_up(block_b, 8), _round_up(B, 8))

    def need(t):
        return (2 * t * D * 4          # x tile, double-buffered
                + 2 * C * D * 4        # centers (constant block, 2 buffers)
                + 2 * t * 512          # labels (t,1) blocks, lane-padded
                + 2 * t * 512          # output (t,1) blocks, lane-padded
                + t * D * 4            # gathered-centers temporary
                + 2 * t * c_pad * 4)   # one-hot temporary + matmul slack

    while tb > 8 and need(tb) > budget:
        tb = max(8, _round_up(tb // 2, 8))

    vmem_limit = int(min(max(need(tb) * 1.2, 32 * 2 ** 20), 112 * 2 ** 20))
    return tb, vmem_limit


def center_loss_pallas(x, centers, labels, *, block_b: int = 1024):
    """x: (B, D) f32, centers: (C, D) f32, labels: (B,) int -> scalar f32 loss."""
    x = jnp.asarray(x, jnp.float32)
    centers = jnp.asarray(centers, jnp.float32)
    labels = jnp.asarray(labels, jnp.int32).reshape(-1)

    B, D = x.shape
    C, Dc = centers.shape
    assert D == Dc and labels.shape[0] == B

    tb, vmem_limit = _pick_tile(B, C, D, block_b)
    padded_b = _round_up(B, tb)
    num_tiles = padded_b // tb

    if padded_b != B:
        x = jnp.pad(x, ((0, padded_b - B), (0, 0)))
        labels = jnp.pad(labels, (0, padded_b - B))   # pad -> class 0, masked in-kernel
    labels2d = labels.reshape(padded_b, 1)

    kernel = functools.partial(_center_loss_kernel, batch_size=B)

    per_row = pl.pallas_call(
        kernel,
        out_shape=jax.ShapeDtypeStruct((padded_b, 1), jnp.float32),
        grid=(num_tiles,),
        in_specs=[
            pl.BlockSpec((tb, 1), lambda i: (i, 0)),   # labels tile
            pl.BlockSpec((tb, D), lambda i: (i, 0)),   # x tile (streams via HBM DMA)
            pl.BlockSpec((C, D), lambda i: (0, 0)),    # centers, VMEM-resident
        ],
        out_specs=pl.BlockSpec((tb, 1), lambda i: (i, 0)),
        compiler_params=pltpu.CompilerParams(
            # No cross-step carry -> batch-tile axis is fully parallel
            # (megacore sharding on v7x; harmless on single-TC v5e/v6e).
            dimension_semantics=("parallel",),
            vmem_limit_bytes=vmem_limit,
        ),
    )(labels2d, x, centers)

    # Final reduce + analytic constant for the B*(C-1) masked clamp(0)=1e-12 entries.
    loss = jnp.sum(per_row) / jnp.float32(B) + jnp.float32((C - 1) * 1e-12)
    return loss


def center_loss_ref(x, centers, labels):
    B = x.shape[0]
    C = centers.shape[0]
    distmat = (
        jnp.sum(x * x, axis=1, keepdims=True)
        + jnp.sum(centers * centers, axis=1, keepdims=True).T
        - 2.0 * x @ centers.T
    )
    mask = (labels[:, None] == jnp.arange(C)[None, :]).astype(jnp.float32)
    dist = jnp.clip(distmat * mask, 1e-12, 1e12)
    return jnp.sum(dist) / B


if __name__ == "__main__":
    key = jax.random.PRNGKey(0)

    # Case 1: shapes consistent with the module (batch=8, num_classes=16, feat_dim=32)
    B, C, D = 8, 16, 32
    kx, kc, kl, k2 = jax.random.split(key, 4)
    x = jax.random.normal(kx, (B, D), dtype=jnp.float32)
    centers = jax.random.normal(kc, (C, D), dtype=jnp.float32)   # ~ nn.Parameter(randn(C, D))
    labels = jax.random.randint(kl, (B,), 0, C, dtype=jnp.int32)

    loss = center_loss_pallas(x, centers, labels)
    jax.block_until_ready(loss)
    ref = center_loss_ref(x, centers, labels)
    assert jnp.allclose(loss, ref, rtol=1e-5, atol=1e-5), (loss, ref)

    # Case 2: non-multiple batch + forced multi-tile grid (exercises padding /
    # parallel per-tile outputs).
    B2, C2, D2 = 300, 10, 64
    kx2, kc2, kl2 = jax.random.split(k2, 3)
    x2 = jax.random.normal(kx2, (B2, D2), dtype=jnp.float32)
    centers2 = jax.random.normal(kc2, (C2, D2), dtype=jnp.float32)
    labels2 = jax.random.randint(kl2, (B2,), 0, C2, dtype=jnp.int32)

    loss2 = center_loss_pallas(x2, centers2, labels2, block_b=128)
    jax.block_until_ready(loss2)
    ref2 = center_loss_ref(x2, centers2, labels2)
    assert jnp.allclose(loss2, ref2, rtol=1e-4, atol=1e-4), (loss2, ref2)

    print("KERNEL_OK")
</pallas_src>

<mosaic_0001>
module attributes {stable_mosaic.version = 11 : i64} {
  func.func @_center_loss_kernel(%arg0: i32, %arg1: memref<8x1xi32, #tpu.memory_space<vmem>>, %arg2: memref<8x32xf32, #tpu.memory_space<vmem>>, %arg3: memref<16x32xf32, #tpu.memory_space<vmem>>, %arg4: memref<8x1xf32, #tpu.memory_space<vmem>>) attributes {dimension_semantics = [#tpu.dimension_semantics<parallel>], iteration_bounds = array<i64: 1>, scalar_prefetch = 0 : i64, scratch_operands = 0 : i64, tpu.core_type = #tpu.core_type<tc>, window_params = [{transform_indices = @transform_0, window_bounds = array<i64: 8, 1>}, {transform_indices = @transform_1, window_bounds = array<i64: 8, 32>}, {pipeline_mode = #tpu.pipeline_mode<synchronous>, transform_indices = @transform_2, window_bounds = array<i64: 16, 32>}, {transform_indices = @transform_3, window_bounds = array<i64: 8, 1>}]} {
    %c0 = arith.constant 0 : index
    %c0_0 = arith.constant 0 : index
    %0 = vector.load %arg1[%c0, %c0_0] : memref<8x1xi32, #tpu.memory_space<vmem>>, vector<8x1xi32>
    %1 = tpu.iota {dimensions = array<i32: 1>} : vector<8x16xi32>
    %2 = vector.broadcast %0 : vector<8x1xi32> to vector<8x16xi32>
    %3 = arith.cmpi eq, %2, %1 : vector<8x16xi32>
    %4 = arith.extui %3 : vector<8x16xi1> to vector<8x16xi32>
    %5 = arith.sitofp %4 : vector<8x16xi32> to vector<8x16xf32>
    %c0_1 = arith.constant 0 : index
    %c0_2 = arith.constant 0 : index
    %6 = vector.load %arg3[%c0_1, %c0_2] : memref<16x32xf32, #tpu.memory_space<vmem>>, vector<16x32xf32>
    %cst = arith.constant dense<0.000000e+00> : vector<8x32xf32>
    %7 = tpu.matmul %5, %6, %cst {dimension_numbers = #tpu.dot_dimension_numbers<[1], [0], [0], [1], [0, 0, 1, 1], [], []>} : vector<8x16xf32>, vector<16x32xf32>, vector<8x32xf32> -> vector<8x32xf32>
    %c0_3 = arith.constant 0 : index
    %c0_4 = arith.constant 0 : index
    %8 = vector.load %arg2[%c0_3, %c0_4] : memref<8x32xf32, #tpu.memory_space<vmem>>, vector<8x32xf32>
    %9 = arith.subf %8, %7 : vector<8x32xf32>
    %10 = arith.mulf %9, %9 : vector<8x32xf32>
    %cst_5 = arith.constant dense<0.000000e+00> : vector<8xf32>
    %11 = vector.multi_reduction <add>, %10, %cst_5 [1] : vector<8x32xf32> to vector<8xf32>
    %12 = vector.shape_cast %11 : vector<8xf32> to vector<8x1xf32>
    %cst_6 = arith.constant 9.99999996E-13 : f32
    %cst_7 = arith.constant 9.99999995E+11 : f32
    %13 = vector.broadcast %cst_6 : f32 to vector<8x1xf32>
    %14 = arith.maximumf %13, %12 : vector<8x1xf32>
    %15 = vector.broadcast %cst_7 : f32 to vector<8x1xf32>
    %16 = arith.minimumf %15, %14 : vector<8x1xf32>
    %c8_i32 = arith.constant 8 : i32
    %17 = arith.muli %arg0, %c8_i32 : i32
    %18 = tpu.iota {dimensions = array<i32: 0>} : vector<8x1xi32>
    %19 = vector.broadcast %17 : i32 to vector<8x1xi32>
    %20 = arith.addi %19, %18 : vector<8x1xi32>
    %c8_i32_8 = arith.constant 8 : i32
    %21 = vector.broadcast %c8_i32_8 : i32 to vector<8x1xi32>
    %22 = arith.cmpi slt, %20, %21 : vector<8x1xi32>
    %cst_9 = arith.constant 0.000000e+00 : f32
    %23 = vector.broadcast %cst_9 : f32 to vector<8x1xf32>
    %24 = arith.select %22, %16, %23 : vector<8x1xi1>, vector<8x1xf32>
    %c0_10 = arith.constant 0 : index
    %c0_11 = arith.constant 0 : index
    %25 = vector.load %arg4[%c0_10, %c0_11] : memref<8x1xf32, #tpu.memory_space<vmem>>, vector<8x1xf32>
    tpu.vector_store %arg4[%c0_10, %c0_11], %24 {strides = array<i32>} : memref<8x1xf32, #tpu.memory_space<vmem>>, vector<8x1xf32>,
    return
  }
  func.func @transform_0(%arg0: i32) -> (i32, i32) {
    %c0_i32 = arith.constant 0 : i32
    %c0_i32_0 = arith.constant 0 : i32
    return %arg0, %c0_i32 : i32, i32
  }
  func.func @transform_1(%arg0: i32) -> (i32, i32) {
    %c0_i32 = arith.constant 0 : i32
    %c0_i32_0 = arith.constant 0 : i32
    return %arg0, %c0_i32 : i32, i32
  }
  func.func @transform_2(%arg0: i32) -> (i32, i32) {
    %c0_i32 = arith.constant 0 : i32
    %c0_i32_0 = arith.constant 0 : i32
    %c0_i32_1 = arith.constant 0 : i32
    return %c0_i32, %c0_i32_0 : i32, i32
  }
  func.func @transform_3(%arg0: i32) -> (i32, i32) {
    %c0_i32 = arith.constant 0 : i32
    %c0_i32_0 = arith.constant 0 : i32
    return %arg0, %c0_i32 : i32, i32
  }
}

</mosaic_0001>

<llo_original>
// kernel: tpu_custom_call.1
$region0: #{tpu_custom_call.1}
  #allocation0 [shape = 'u32[]', space=smem, size = 0x4, offset = 0x4, fixed_abs, tag = 'smem constant byte address 0x4 - core index']
  #allocation1 [shape = 'u32[144,128]{1,0:T(1,128)}', space=vmem, size = 0x12000, scoped, tag = 'internal scratch']
  %s0 = inlined_call_operand.vmem [shape: s32[8,1], index: 0, kind: input, shape index: {}]
  %s1 = inlined_call_operand.hbm [shape: f32[8,32], index: 1, kind: input, shape index: {}]
  %s2 = inlined_call_operand.vmem [shape: f32[16,32], index: 2, kind: input, shape index: {}]
  %s3 = inlined_call_operand.vmem [shape: f32[8,1], index: 3, kind: output, shape index: {}]
  %s4 = sld [smem:[#allocation0]]
  $region26: #{tpu_custom_call.1} parent=0
    _
  %s6 = ssub.s32 1, %s4
  %s7 = scalar_select 0, %s6, %s4
  $region1: #{tpu_custom_call.1} parent=0
    #allocation2 [shape = 'u8[4096]{0}', space=vmem, size = 0x1000, scoped, tag = 'input window, operand 1, single buffered']
    #allocation3 [shape = 's32[1]{0}', space=sflag, size = 0x4, scoped, tag = 'scoped memory for tpu_custom_call.1']
    %8 = vsyncpa [#allocation3], 0
    // Predicated region
    $region2: #{tpu_custom_call.1} parent=1 // pred_check
      _
    $region3: #{tpu_custom_call.1} parent=1 // pred_check_branch
      %10 = sbr.rel (0) target = $region5
    $region4: #{tpu_custom_call.1} parent=1 // pred_region
      _
    $region5: #{tpu_custom_call.1} parent=1 // pred_fallthru
      _
    // Predicated region
    $region6: #{tpu_custom_call.1} parent=1 // pred_check
      _
    $region7: #{tpu_custom_call.1} parent=1 // pred_check_branch
      %12 = sbr.rel (0) target = $region9
    $region8: #{tpu_custom_call.1} parent=1 // pred_region
      %s14 = ssub.s32 128, 128
      %15 = vsyncadd [#allocation3], %s14
      %s17 = sshll.u32 [#allocation2], 4
      %s18 = int_to_ptr.vmem [resolvable:$true] %s17
      %20 = dma.hbm_to_vmem [thread:$0]  %s1, 128, %s18, [#allocation3]
    $region9: #{tpu_custom_call.1} parent=1 // pred_fallthru
      _
    // Predicated region
    $region10: #{tpu_custom_call.1} parent=1 // pred_check
      _
    $region11: #{tpu_custom_call.1} parent=1 // pred_check_branch
      %22 = sbr.rel (0) target = $region13
    $region12: #{tpu_custom_call.1} parent=1 // pred_region
      _
    $region13: #{tpu_custom_call.1} parent=1 // pred_fallthru
      _
    // Predicated region
    $region14: #{tpu_custom_call.1} parent=1 // pred_check
      _
    $region15: #{tpu_custom_call.1} parent=1 // pred_check_branch
      %24 = sbr.rel (0) target = $region17
    $region16: #{tpu_custom_call.1} parent=1 // pred_region
      %25 = dma.done [#allocation3], 128
    $region17: #{tpu_custom_call.1} parent=1 // pred_fallthru
      _
    %v26 = vld [vmem:[%s0] sm:$0xff]
    %v27 = vlaneseq
    %v28 = vand.u32 %v27, 127
    %29 = vset.pattern.permute.xlu0 0
    %30 = vperm.xlu0 %29, %v26
    %v31 = vpop.permute.xlu0 %30
    %vm32 = vcmp.eq.s32.totalorder %v31, %v28
    %v33 = vsel %vm32, 1, 0
    %v34 = vcvt.s32.f32 %v33
    %v35 = vld [vmem:[%s2] sm:$0xff]
    %v36 = vld [vmem:[%s2 + $0x8] sm:$0xff]
    %vm37 = vcmask 130048
    %v39 = vsel %vm37, %v34, 0
    %41 = vmatprep.subr.mxu0 0.0
    %42 = vmatpush1.msra.mxu0 %v35
    %43 = vmatprep.subr.mxu0 0.0
    %44 = vmatpush1.msra.mxu0 %v36
    %45 = vmatprep.subr.mxu0 0.0
    %46 = vmatpush1.msra.mxu0 0.0
    %47 = vmatprep.subr.mxu0 0.0
    %48 = vmatpush1.msra.mxu0 0.0
    %49 = vmatprep.subr.mxu0 0.0
    %50 = vmatpush1.msra.mxu0 0.0
    %51 = vmatprep.subr.mxu0 0.0
    %52 = vmatpush1.msra.mxu0 0.0
    %53 = vmatprep.subr.mxu0 0.0
    %54 = vmatpush1.msra.mxu0 0.0
    %55 = vmatprep.subr.mxu0 0.0
    %56 = vmatpush1.msra.mxu0 0.0
    %57 = vmatprep.subr.mxu0 0.0
    %58 = vmatpush1.msra.mxu0 0.0
    %59 = vmatprep.subr.mxu0 0.0
    %60 = vmatpush1.msra.mxu0 0.0
    %61 = vmatprep.subr.mxu0 0.0
    %62 = vmatpush1.msra.mxu0 0.0
    %63 = vmatprep.subr.mxu0 0.0
    %64 = vmatpush1.msra.mxu0 0.0
    %65 = vmatprep.subr.mxu0 0.0
    %66 = vmatpush1.msra.mxu0 0.0
    %67 = vmatprep.subr.mxu0 0.0
    %68 = vmatpush1.msra.mxu0 0.0
    %69 = vmatprep.subr.mxu0 0.0
    %70 = vmatpush1.msra.mxu0 0.0
    %71 = vmatprep.subr.mxu0 0.0
    %72 = vmatpush1.msra.mxu0 0.0
    %73 = vmatprep.subr.mxu0 0.0
    %74 = vmatpush1.msra.mxu0 0.0
    %75 = vmatprep.subr.mxu0 0.0
    %76 = vmatpush1.msra.mxu0 0.0
    %77 = vmatprep.subr.mxu0 0.0
    %78 = vmatpush1.msra.mxu0 0.0
    %79 = vmatprep.subr.mxu0 0.0
    %80 = vmatpush1.msra.mxu0 0.0
    %81 = vmatprep.subr.mxu0 0.0
    %82 = vmatpush1.msra.mxu0 0.0
    %83 = vmatprep.subr.mxu0 0.0
    %84 = vmatpush1.msra.mxu0 0.0
    %85 = vmatprep.subr.mxu0 0.0
    %86 = vmatpush1.msra.mxu0 0.0
    %87 = vmatprep.subr.mxu0 0.0
    %88 = vmatpush1.msra.mxu0 0.0
    %89 = vmatprep.subr.mxu0 0.0
    %90 = vmatpush1.msra.mxu0 0.0
    %91 = vmatprep.subr.mxu0 0.0
    %92 = vmatpush1.msra.mxu0 0.0
    %93 = vmatprep.subr.mxu0 0.0
    %94 = vmatpush1.msra.mxu0 0.0
    %95 = vmatprep.subr.mxu0 0.0
    %96 = vmatpush1.msra.mxu0 0.0
    %97 = vmatprep.subr.mxu0 0.0
    %98 = vmatpush1.msra.mxu0 0.0
    %99 = vmatprep.subr.mxu0 0.0
    %100 = vmatpush1.msra.mxu0 0.0
    %101 = vmatprep.subr.mxu0 0.0
    %102 = vmatpush1.msra.mxu0 0.0
    %103 = vmatprep.subr.mxu0 0.0
    %104 = vmatpush1.msra.mxu0 0.0
    %105 = vmatprep.mubr.f32.mxu0 0.0
    %106 = vmatmul.mubr.f32.gmra.mrb[0].mxu0 %v39
    %v107 = vpop.f32.mrb[0].mxu0
    %v108 = vadd.f32 0.0, %v107
    %v109 = vpop.f32.mrb[0].mxu0
    %110 = vdwg.mxu0
    %v111 = vld [vmem:[#allocation2] sm:$0xff]
    %v112 = vsub.f32 %v111, %v108
    %v113 = vmul.f32 %v112, %v112
    %vm114 = vcmask 261120
    %v115 = vsel %vm114, %v113, 0.0
    %116 = vadd.xlane.f32.xlu0 %v115
    %v117 = vpop.xlane.xlu0 %116
    %v118 = vmax.f32 %v117, 1e-12
    %v119 = vmin.f32 %v118, 1e+12
    %s120 = smul.u32 0, 8
    %v121 = vlaneseq
    %v122 = vshrl.u32 %v121, 7
    %v123 = vstv %s120
    %v124 = vadd.s32 %v123, %v122
    %vm125 = vcmp.lt.s32.totalorder %v124, 8
    %v126 = vsel %vm125, %v119, 0.0
    %vm127 = vcmask 7168
    %128 = vst.msk [vmem:[%s3] sm:$0xff] %vm127, %v126
    // Predicated region
    $region18: #{tpu_custom_call.1} parent=1 // pred_check
      _
    $region19: #{tpu_custom_call.1} parent=1 // pred_check_branch
      %130 = sbr.rel (0) target = $region21
    $region20: #{tpu_custom_call.1} parent=1 // pred_region
      _
    $region21: #{tpu_custom_call.1} parent=1 // pred_fallthru
      _
    // Predicated region
    $region22: #{tpu_custom_call.1} parent=1 // pred_check
      _
    $region23: #{tpu_custom_call.1} parent=1 // pred_check_branch
      %132 = sbr.rel (0) target = $region25
    $region24: #{tpu_custom_call.1} parent=1 // pred_region
      _
    $region25: #{tpu_custom_call.1} parent=1 // pred_fallthru
      _
    %133 = vsyncpa [#allocation3], 1

</llo_original>
